<compile_context>
chip_gen: v6e
topology: v6e:2x2x1
jax: 0.10.0
libtpu: 0.0.40
codegen_flags: <defaults>
</compile_context>

<pallas_src>
import functools

import jax
import jax.numpy as jnp
from jax.experimental import pallas as pl
from jax.experimental.pallas import tpu as pltpu


def _round_up(a, m):
    return (a + m - 1) // m * m


def toy_mlp_kernel(x_ref, w1_ref, b1_ref, w2_ref, b2_ref, o_ref):
    # x_ref:  [tb, 10]  batch tile (streamed / double-buffered)
    # w1_ref: [10, 10]  W1^T, VMEM-resident across the whole grid (constant index_map)
    # b1_ref: [1, 10]   b1
    # w2_ref: [10, 5]   W2^T
    # b2_ref: [1, 5]    b2
    # o_ref:  [tb, 5]   output tile
    h = jnp.dot(
        x_ref[...],
        w1_ref[...],
        preferred_element_type=jnp.float32,
        precision=jax.lax.Precision.HIGHEST,
    ) + b1_ref[...]
    h = jnp.maximum(h, 0.0)  # ReLU
    y = jnp.dot(
        h,
        w2_ref[...],
        preferred_element_type=jnp.float32,
        precision=jax.lax.Precision.HIGHEST,
    ) + b2_ref[...]
    o_ref[...] = y.astype(o_ref.dtype)


@functools.partial(jax.jit, static_argnames=("block_batch",))
def toy_model_forward(x, w1, b1, w2, b2, *, block_batch=4096):
    """Forward pass of ToyModel.

    x:  [B, 10] f32
    w1: [10, 10], b1: [10]   (PyTorch nn.Linear layout: weight is [out, in])
    w2: [5, 10],  b2: [5]
    Returns [B, 5].
    """
    B, f_in = x.shape
    f_hid = w1.shape[0]
    f_out = w2.shape[0]

    # Batch tile: large enough to amortize per-grid-step overhead, small enough to
    # leave >= 2 parallel grid steps for megacore (v7x) when the batch is big.
    if B <= 8:
        tb = 8
    else:
        tb = min(block_batch, _round_up(-(-B // 2), 8))
    tb = _round_up(tb, 8)
    grid = (pl.cdiv(B, tb),)

    # Tiny param repacks (transpose to [in, out]); negligible next to x traffic.
    w1t = w1.T.astype(x.dtype)          # [f_in, f_hid]
    b1r = b1[None, :].astype(x.dtype)   # [1, f_hid]
    w2t = w2.T.astype(x.dtype)          # [f_hid, f_out]
    b2r = b2[None, :].astype(x.dtype)   # [1, f_out]

    itemsize = jnp.dtype(x.dtype).itemsize
    flops = 2 * B * (f_in * f_hid + f_hid * f_out)
    bytes_accessed = itemsize * (
        B * (f_in + f_out) + f_in * f_hid + f_hid + f_hid * f_out + f_out
    )

    out = pl.pallas_call(
        toy_mlp_kernel,
        out_shape=jax.ShapeDtypeStruct((B, f_out), x.dtype),
        grid=grid,
        in_specs=[
            # x tiles stream through the double-buffered pipeline,
            pl.BlockSpec((tb, f_in), lambda i: (i, 0)),
            # params use constant index maps -> DMA'd once, VMEM-resident.
            pl.BlockSpec((f_in, f_hid), lambda i: (0, 0)),
            pl.BlockSpec((1, f_hid), lambda i: (0, 0)),
            pl.BlockSpec((f_hid, f_out), lambda i: (0, 0)),
            pl.BlockSpec((1, f_out), lambda i: (0, 0)),
        ],
        out_specs=pl.BlockSpec((tb, f_out), lambda i: (i, 0)),
        compiler_params=pltpu.CompilerParams(
            dimension_semantics=("parallel",),  # batch axis: megacore-shardable on v7x
        ),
        cost_estimate=pl.CostEstimate(
            flops=flops, transcendentals=0, bytes_accessed=bytes_accessed
        ),
    )(x, w1t, b1r, w2t, b2r)
    return out


def init_params(key):
    """Deterministic init mimicking nn.Linear's uniform(-1/sqrt(fan_in), 1/sqrt(fan_in)).

    Parameters are kept in the PyTorch layout (weight: [out, in], bias: [out]).
    """
    k1, k2, k3, k4 = jax.random.split(key, 4)
    bound = 1.0 / jnp.sqrt(10.0)  # fan_in = 10 for both layers
    w1 = jax.random.uniform(k1, (10, 10), jnp.float32, -bound, bound)
    b1 = jax.random.uniform(k2, (10,), jnp.float32, -bound, bound)
    w2 = jax.random.uniform(k3, (5, 10), jnp.float32, -bound, bound)
    b2 = jax.random.uniform(k4, (5,), jnp.float32, -bound, bound)
    return w1, b1, w2, b2


if __name__ == "__main__":
    key = jax.random.PRNGKey(0)
    kx_small, kx_big, kp = jax.random.split(key, 3)

    w1, b1, w2, b2 = init_params(kp)

    def reference(x):
        h = jnp.maximum(
            jnp.dot(x, w1.T, precision=jax.lax.Precision.HIGHEST) + b1, 0.0
        )
        return jnp.dot(h, w2.T, precision=jax.lax.Precision.HIGHEST) + b2

    # Small batch (matches the original toy example): single grid step.
    x_small = jax.random.normal(kx_small, (8, 10), jnp.float32)
    out_small = jax.block_until_ready(toy_model_forward(x_small, w1, b1, w2, b2))
    assert out_small.shape == (8, 5)
    assert jnp.allclose(out_small, reference(x_small), atol=1e-5, rtol=1e-5)

    # Larger, non-multiple batch: exercises batch tiling + ragged last block + parallel grid.
    x_big = jax.random.normal(kx_big, (1000, 10), jnp.float32)
    out_big = jax.block_until_ready(
        toy_model_forward(x_big, w1, b1, w2, b2, block_batch=256)
    )
    assert out_big.shape == (1000, 5)
    assert jnp.allclose(out_big, reference(x_big), atol=1e-5, rtol=1e-5)

    print("KERNEL_OK")
</pallas_src>

<mosaic_0001>
module attributes {stable_mosaic.version = 11 : i64} {
  func.func @toy_mlp_kernel(%arg0: i32, %arg1: memref<8x10xf32, #tpu.memory_space<vmem>>, %arg2: memref<10x10xf32, #tpu.memory_space<vmem>>, %arg3: memref<1x10xf32, #tpu.memory_space<vmem>>, %arg4: memref<10x5xf32, #tpu.memory_space<vmem>>, %arg5: memref<1x5xf32, #tpu.memory_space<vmem>>, %arg6: memref<8x5xf32, #tpu.memory_space<vmem>>) attributes {dimension_semantics = [#tpu.dimension_semantics<parallel>], iteration_bounds = array<i64: 1>, scalar_prefetch = 0 : i64, scratch_operands = 0 : i64, tpu.core_type = #tpu.core_type<tc>, window_params = [{transform_indices = @transform_0, window_bounds = array<i64: 8, 10>}, {pipeline_mode = #tpu.pipeline_mode<synchronous>, transform_indices = @transform_1, window_bounds = array<i64: 10, 10>}, {pipeline_mode = #tpu.pipeline_mode<synchronous>, transform_indices = @transform_2, window_bounds = array<i64: 1, 10>}, {pipeline_mode = #tpu.pipeline_mode<synchronous>, transform_indices = @transform_3, window_bounds = array<i64: 10, 5>}, {pipeline_mode = #tpu.pipeline_mode<synchronous>, transform_indices = @transform_4, window_bounds = array<i64: 1, 5>}, {transform_indices = @transform_5, window_bounds = array<i64: 8, 5>}]} {
    %c0 = arith.constant 0 : index
    %c0_0 = arith.constant 0 : index
    %0 = vector.load %arg1[%c0, %c0_0] : memref<8x10xf32, #tpu.memory_space<vmem>>, vector<8x10xf32>
    %c0_1 = arith.constant 0 : index
    %c0_2 = arith.constant 0 : index
    %1 = vector.load %arg2[%c0_1, %c0_2] : memref<10x10xf32, #tpu.memory_space<vmem>>, vector<10x10xf32>
    %cst = arith.constant dense<0.000000e+00> : vector<8x10xf32>
    %2 = tpu.matmul %0, %1, %cst {dimension_numbers = #tpu.dot_dimension_numbers<[1], [0], [0], [1], [0, 0, 1, 1], [], []>, precision = #tpu.contract_precision<fp32>} : vector<8x10xf32>, vector<10x10xf32>, vector<8x10xf32> -> vector<8x10xf32>
    %c0_3 = arith.constant 0 : index
    %c0_4 = arith.constant 0 : index
    %3 = vector.load %arg3[%c0_3, %c0_4] : memref<1x10xf32, #tpu.memory_space<vmem>>, vector<1x10xf32>
    %4 = vector.broadcast %3 : vector<1x10xf32> to vector<8x10xf32>
    %5 = arith.addf %2, %4 : vector<8x10xf32>
    %cst_5 = arith.constant 0.000000e+00 : f32
    %6 = vector.broadcast %cst_5 : f32 to vector<8x10xf32>
    %7 = arith.maximumf %5, %6 : vector<8x10xf32>
    %c0_6 = arith.constant 0 : index
    %c0_7 = arith.constant 0 : index
    %8 = vector.load %arg4[%c0_6, %c0_7] : memref<10x5xf32, #tpu.memory_space<vmem>>, vector<10x5xf32>
    %cst_8 = arith.constant dense<0.000000e+00> : vector<8x5xf32>
    %9 = tpu.matmul %7, %8, %cst_8 {dimension_numbers = #tpu.dot_dimension_numbers<[1], [0], [0], [1], [0, 0, 1, 1], [], []>, precision = #tpu.contract_precision<fp32>} : vector<8x10xf32>, vector<10x5xf32>, vector<8x5xf32> -> vector<8x5xf32>
    %c0_9 = arith.constant 0 : index
    %c0_10 = arith.constant 0 : index
    %10 = vector.load %arg5[%c0_9, %c0_10] : memref<1x5xf32, #tpu.memory_space<vmem>>, vector<1x5xf32>
    %11 = vector.broadcast %10 : vector<1x5xf32> to vector<8x5xf32>
    %12 = arith.addf %9, %11 : vector<8x5xf32>
    %c0_11 = arith.constant 0 : index
    %c0_12 = arith.constant 0 : index
    %13 = vector.load %arg6[%c0_11, %c0_12] : memref<8x5xf32, #tpu.memory_space<vmem>>, vector<8x5xf32>
    tpu.vector_store %arg6[%c0_11, %c0_12], %12 {strides = array<i32>} : memref<8x5xf32, #tpu.memory_space<vmem>>, vector<8x5xf32>,
    return
  }
  func.func @transform_0(%arg0: i32) -> (i32, i32) {
    %c0_i32 = arith.constant 0 : i32
    %c0_i32_0 = arith.constant 0 : i32
    return %arg0, %c0_i32 : i32, i32
  }
  func.func @transform_1(%arg0: i32) -> (i32, i32) {
    %c0_i32 = arith.constant 0 : i32
    %c0_i32_0 = arith.constant 0 : i32
    %c0_i32_1 = arith.constant 0 : i32
    return %c0_i32, %c0_i32_0 : i32, i32
  }
  func.func @transform_2(%arg0: i32) -> (i32, i32) {
    %c0_i32 = arith.constant 0 : i32
    %c0_i32_0 = arith.constant 0 : i32
    %c0_i32_1 = arith.constant 0 : i32
    return %c0_i32, %c0_i32_0 : i32, i32
  }
  func.func @transform_3(%arg0: i32) -> (i32, i32) {
    %c0_i32 = arith.constant 0 : i32
    %c0_i32_0 = arith.constant 0 : i32
    %c0_i32_1 = arith.constant 0 : i32
    return %c0_i32, %c0_i32_0 : i32, i32
  }
  func.func @transform_4(%arg0: i32) -> (i32, i32) {
    %c0_i32 = arith.constant 0 : i32
    %c0_i32_0 = arith.constant 0 : i32
    %c0_i32_1 = arith.constant 0 : i32
    return %c0_i32, %c0_i32_0 : i32, i32
  }
  func.func @transform_5(%arg0: i32) -> (i32, i32) {
    %c0_i32 = arith.constant 0 : i32
    %c0_i32_0 = arith.constant 0 : i32
    return %arg0, %c0_i32 : i32, i32
  }
}

</mosaic_0001>

<llo_original>
// kernel: toy_model_forward.1
$region0: #{toy_model_forward.1}
  #allocation0 [shape = 'u32[]', space=smem, size = 0x4, offset = 0x4, fixed_abs, tag = 'smem constant byte address 0x4 - core index']
  #allocation1 [shape = 'u32[144,128]{1,0:T(1,128)}', space=vmem, size = 0x12000, scoped, tag = 'internal scratch']
  %s0 = inlined_call_operand.vmem [shape: f32[8,10], index: 0, kind: input, shape index: {}]
  %s1 = inlined_call_operand.vmem [shape: f32[10,10], index: 1, kind: input, shape index: {}]
  %s2 = inlined_call_operand.vmem [shape: f32[1,10], index: 2, kind: input, shape index: {}]
  %s3 = inlined_call_operand.vmem [shape: f32[10,5], index: 3, kind: input, shape index: {}]
  %s4 = inlined_call_operand.vmem [shape: f32[1,5], index: 4, kind: input, shape index: {}]
  %s5 = inlined_call_operand.hbm [shape: f32[8,5], index: 5, kind: output, shape index: {}]
  %s6 = sld [smem:[#allocation0]]
  $region30: #{toy_model_forward.1} parent=0
    _
  %s8 = ssub.s32 1, %s6
  %s9 = scalar_select 0, %s8, %s6
  $region1: #{toy_model_forward.1} parent=0
    #allocation2 [shape = 'u8[4096]{0}', space=vmem, size = 0x1000, scoped, tag = 'output window, operand 0, single buffered']
    #allocation3 [shape = 's32[1]{0}', space=sflag, size = 0x4, scoped, tag = 'scoped memory for toy_model_forward.1']
    %10 = vsyncpa [#allocation3], 0
    // Predicated region
    $region2: #{toy_model_forward.1} parent=1 // pred_check
      _
    $region3: #{toy_model_forward.1} parent=1 // pred_check_branch
      %12 = sbr.rel (0) target = $region5
    $region4: #{toy_model_forward.1} parent=1 // pred_region
      _
    $region5: #{toy_model_forward.1} parent=1 // pred_fallthru
      _
    // Predicated region
    $region6: #{toy_model_forward.1} parent=1 // pred_check
      _
    $region7: #{toy_model_forward.1} parent=1 // pred_check_branch
      %14 = sbr.rel (0) target = $region9
    $region8: #{toy_model_forward.1} parent=1 // pred_region
      _
    $region9: #{toy_model_forward.1} parent=1 // pred_fallthru
      _
    // Predicated region
    $region10: #{toy_model_forward.1} parent=1 // pred_check
      _
    $region11: #{toy_model_forward.1} parent=1 // pred_check_branch
      %16 = sbr.rel (0) target = $region13
    $region12: #{toy_model_forward.1} parent=1 // pred_region
      _
    $region13: #{toy_model_forward.1} parent=1 // pred_fallthru
      _
    // Predicated region
    $region14: #{toy_model_forward.1} parent=1 // pred_check
      _
    $region15: #{toy_model_forward.1} parent=1 // pred_check_branch
      %18 = sbr.rel (0) target = $region17
    $region16: #{toy_model_forward.1} parent=1 // pred_region
      _
    $region17: #{toy_model_forward.1} parent=1 // pred_fallthru
      _
    // Predicated region
    $region18: #{toy_model_forward.1} parent=1 // pred_check
      _
    $region19: #{toy_model_forward.1} parent=1 // pred_check_branch
      %20 = sbr.rel (0) target = $region21
    $region20: #{toy_model_forward.1} parent=1 // pred_region
      _
    $region21: #{toy_model_forward.1} parent=1 // pred_fallthru
      _
    %v21 = vld [vmem:[%s0] sm:$0xff]
    %v22 = vld [vmem:[%s1] sm:$0xff]
    %v23 = vld [vmem:[%s1 + $0x8] sm:$0x3]
    %v24 = vld [vmem:[%s2] sm:$0x1]
    %v26 = vlaneseq
    %v27 = vshrl.u32 %v26, 7
    %v28 = vsub.s32 0, %v27
    %v29 = vrot.slane %v24, %v28
    %vm31 = vcmask 80896
    %v33 = vsel %vm31, %v21, 0
    %vm35 = vcmask 1041408
    %v37 = vsel %vm35, %v23, 0
    %39 = vmatprep.subr.mxu0 0.0
    %40 = vmatpush1.msra.mxu0 0.0
    %41 = vmatprep.subr.mxu0 0.0
    %42 = vmatpush1.msra.mxu0 0.0
    %43 = vmatprep.subr.mxu0 0.0
    %44 = vmatpush1.msra.mxu0 0.0
    %45 = vmatprep.subr.mxu0 0.0
    %46 = vmatpush1.msra.mxu0 0.0
    %47 = vmatprep.subr.mxu0 0.0
    %48 = vmatpush1.msra.mxu0 0.0
    %49 = vmatprep.subr.mxu0 0.0
    %50 = vmatpush1.msra.mxu0 0.0
    %51 = vmatprep.subr.mxu0 0.0
    %52 = vmatpush1.msra.mxu0 0.0
    %53 = vmatprep.subr.mxu0 0.0
    %54 = vmatpush1.msra.mxu0 0.0
    %55 = vmatprep.subr.mxu0 0.0
    %56 = vmatpush1.msra.mxu0 0.0
    %57 = vmatprep.subr.mxu0 0.0
    %58 = vmatpush1.msra.mxu0 0.0
    %59 = vmatprep.subr.mxu0 0.0
    %60 = vmatpush1.msra.mxu0 0.0
    %61 = vmatprep.subr.mxu0 0.0
    %62 = vmatpush1.msra.mxu0 0.0
    %63 = vmatprep.subr.mxu0 0.0
    %64 = vmatpush1.msra.mxu0 0.0
    %65 = vmatprep.subr.mxu0 0.0
    %66 = vmatpush1.msra.mxu0 0.0
    %67 = vmatprep.subr.mxu0 0.0
    %v68 = vand.u32 %v37, 4294901760
    %69 = vmatpush1.msra.mxu0 %v68
    %70 = vmatprep.subr.mxu0 0.0
    %v71 = vand.u32 %v22, 4294901760
    %72 = vmatpush1.msra.mxu0 %v71
    %73 = vmatprep.subr.mxu0 0.0
    %74 = vmatpush2.msra.mxu0 0.0
    %75 = vmatprep.subr.mxu0 0.0
    %76 = vmatpush2.msra.mxu0 0.0
    %77 = vmatprep.subr.mxu0 0.0
    %78 = vmatpush2.msra.mxu0 0.0
    %79 = vmatprep.subr.mxu0 0.0
    %80 = vmatpush2.msra.mxu0 0.0
    %81 = vmatprep.subr.mxu0 0.0
    %82 = vmatpush2.msra.mxu0 0.0
    %83 = vmatprep.subr.mxu0 0.0
    %84 = vmatpush2.msra.mxu0 0.0
    %85 = vmatprep.subr.mxu0 0.0
    %86 = vmatpush2.msra.mxu0 0.0
    %87 = vmatprep.subr.mxu0 0.0
    %88 = vmatpush2.msra.mxu0 0.0
    %89 = vmatprep.subr.mxu0 0.0
    %90 = vmatpush2.msra.mxu0 0.0
    %91 = vmatprep.subr.mxu0 0.0
    %92 = vmatpush2.msra.mxu0 0.0
    %93 = vmatprep.subr.mxu0 0.0
    %94 = vmatpush2.msra.mxu0 0.0
    %95 = vmatprep.subr.mxu0 0.0
    %96 = vmatpush2.msra.mxu0 0.0
    %97 = vmatprep.subr.mxu0 0.0
    %98 = vmatpush2.msra.mxu0 0.0
    %99 = vmatprep.subr.mxu0 0.0
    %100 = vmatpush2.msra.mxu0 0.0
    %101 = vmatprep.subr.mxu0 0.0
    %102 = vmatpush2.msra.mxu0 0.0
    %103 = vmatprep.subr.mxu0 0.0
    %104 = vmatpush2.msra.mxu0 0.0
    %105 = vmatprep.mubr.f32.mxu0 0.0
    %v106 = vand.u32 %v33, 4294901760
    %v107 = vsub.f32 %v33, %v106
    %v108 = vand.u32 %v107, 4294901760
    %v109 = vsub.f32 %v107, %v108
    %v110 = vand.u32 %v109, 4294901760
    %111 = vmatmul.mubr.f32.gmra.mxu0 %v110
    %v112 = vpop.f32.mrf.mxu0
    %v113 = vadd.f32 %v29, %v112
    %v114 = vpop.f32.mrf.mxu0
    %115 = vdwg.mxu0
    %116 = vmatprep.subr.mxu0 0.0
    %117 = vmatpush1.msra.mxu0 0.0
    %118 = vmatprep.subr.mxu0 0.0
    %119 = vmatpush1.msra.mxu0 0.0
    %120 = vmatprep.subr.mxu0 0.0
    %121 = vmatpush1.msra.mxu0 0.0
    %122 = vmatprep.subr.mxu0 0.0
    %123 = vmatpush1.msra.mxu0 0.0
    %124 = vmatprep.subr.mxu0 0.0
    %125 = vmatpush1.msra.mxu0 0.0
    %126 = vmatprep.subr.mxu0 0.0
    %127 = vmatpush1.msra.mxu0 0.0
    %128 = vmatprep.subr.mxu0 0.0
    %129 = vmatpush1.msra.mxu0 0.0
    %130 = vmatprep.subr.mxu0 0.0
    %131 = vmatpush1.msra.mxu0 0.0
    %132 = vmatprep.subr.mxu0 0.0
    %133 = vmatpush1.msra.mxu0 0.0
    %134 = vmatprep.subr.mxu0 0.0
    %135 = vmatpush1.msra.mxu0 0.0
    %136 = vmatprep.subr.mxu0 0.0
    %137 = vmatpush1.msra.mxu0 0.0
    %138 = vmatprep.subr.mxu0 0.0
    %139 = vmatpush1.msra.mxu0 0.0
    %140 = vmatprep.subr.mxu0 0.0
    %141 = vmatpush1.msra.mxu0 0.0
    %142 = vmatprep.subr.mxu0 0.0
    %143 = vmatpush1.msra.mxu0 0.0
    %144 = vmatprep.subr.mxu0 0.0
    %v145 = vand.u32 %v37, 4294901760
    %v146 = vsub.f32 %v37, %v145
    %v147 = vand.u32 %v146, 4294901760
    %v148 = vsub.f32 %v146, %v147
    %v149 = vand.u32 %v148, 4294901760
    %150 = vmatpush1.msra.mxu0 %v149
    %151 = vmatprep.subr.mxu0 0.0
    %v152 = vand.u32 %v22, 4294901760
    %v153 = vsub.f32 %v22, %v152
    %v154 = vand.u32 %v153, 4294901760
    %v155 = vsub.f32 %v153, %v154
    %v156 = vand.u32 %v155, 4294901760
    %157 = vmatpush1.msra.mxu0 %v156
    %158 = vmatprep.subr.mxu0 0.0
    %159 = vmatpush2.msra.mxu0 0.0
    %160 = vmatprep.subr.mxu0 0.0
    %161 = vmatpush2.msra.mxu0 0.0
    %162 = vmatprep.subr.mxu0 0.0
    %163 = vmatpush2.msra.mxu0 0.0
    %164 = vmatprep.subr.mxu0 0.0
    %165 = vmatpush2.msra.mxu0 0.0
    %166 = vmatprep.subr.mxu0 0.0
    %167 = vmatpush2.msra.mxu0 0.0
    %168 = vmatprep.subr.mxu0 0.0
    %169 = vmatpush2.msra.mxu0 0.0
    %170 = vmatprep.subr.mxu0 0.0
    %171 = vmatpush2.msra.mxu0 0.0
    %172 = vmatprep.subr.mxu0 0.0
    %173 = vmatpush2.msra.mxu0 0.0
    %174 = vmatprep.subr.mxu0 0.0
    %175 = vmatpush2.msra.mxu0 0.0
    %176 = vmatprep.subr.mxu0 0.0
    %177 = vmatpush2.msra.mxu0 0.0
    %178 = vmatprep.subr.mxu0 0.0
    %179 = vmatpush2.msra.mxu0 0.0
    %180 = vmatprep.subr.mxu0 0.0
    %181 = vmatpush2.msra.mxu0 0.0
    %182 = vmatprep.subr.mxu0 0.0
    %183 = vmatpush2.msra.mxu0 0.0
    %184 = vmatprep.subr.mxu0 0.0
    %185 = vmatpush2.msra.mxu0 0.0
    %186 = vmatprep.subr.mxu0 0.0
    %187 = vmatpush2.msra.mxu0 0.0
    %188 = vmatprep.subr.mxu0 0.0
    %189 = vmatpush2.msra.mxu0 0.0
    %190 = vmatprep.mubr.f32.mxu0 0.0
    %v191 = vand.u32 %v33, 4294901760
    %192 = vmatmul.mubr.f32.gmra.mxu0 %v191
    %v193 = vpop.f32.mrf.mxu0
    %v194 = vadd.f32 %v113, %v193
    %v195 = vpop.f32.mrf.mxu0
    %196 = vdwg.mxu0
    %197 = vmatprep.subr.mxu0 0.0
    %198 = vmatpush1.msra.mxu0 0.0
    %199 = vmatprep.subr.mxu0 0.0
    %200 = vmatpush1.msra.mxu0 0.0
    %201 = vmatprep.subr.mxu0 0.0
    %202 = vmatpush1.msra.mxu0 0.0
    %203 = vmatprep.subr.mxu0 0.0
    %204 = vmatpush1.msra.mxu0 0.0
    %205 = vmatprep.subr.mxu0 0.0
    %206 = vmatpush1.msra.mxu0 0.0
    %207 = vmatprep.subr.mxu0 0.0
    %208 = vmatpush1.msra.mxu0 0.0
    %209 = vmatprep.subr.mxu0 0.0
    %210 = vmatpush1.msra.mxu0 0.0
    %211 = vmatprep.subr.mxu0 0.0
    %212 = vmatpush1.msra.mxu0 0.0
    %213 = vmatprep.subr.mxu0 0.0
    %214 = vmatpush1.msra.mxu0 0.0
    %215 = vmatprep.subr.mxu0 0.0
    %216 = vmatpush1.msra.mxu0 0.0
    %217 = vmatprep.subr.mxu0 0.0
    %218 = vmatpush1.msra.mxu0 0.0
    %219 = vmatprep.subr.mxu0 0.0
    %220 = vmatpush1.msra.mxu0 0.0
    %221 = vmatprep.subr.mxu0 0.0
    %222 = vmatpush1.msra.mxu0 0.0
    %223 = vmatprep.subr.mxu0 0.0
    %224 = vmatpush1.msra.mxu0 0.0
    %225 = vmatprep.subr.mxu0 0.0
    %v226 = vand.u32 %v37, 4294901760
    %v227 = vsub.f32 %v37, %v226
    %228 = vmatpush1.msra.mxu0 %v227
    %229 = vmatprep.subr.mxu0 0.0
    %v230 = vand.u32 %v22, 4294901760
    %v231 = vsub.f32 %v22, %v230
    %232 = vmatpush1.msra.mxu0 %v231
    %233 = vmatprep.subr.mxu0 0.0
    %234 = vmatpush2.msra.mxu0 0.0
    %235 = vmatprep.subr.mxu0 0.0
    %236 = vmatpush2.msra.mxu0 0.0
    %237 = vmatprep.subr.mxu0 0.0
    %238 = vmatpush2.msra.mxu0 0.0
    %239 = vmatprep.subr.mxu0 0.0
    %240 = vmatpush2.msra.mxu0 0.0
    %241 = vmatprep.subr.mxu0 0.0
    %242 = vmatpush2.msra.mxu0 0.0
    %243 = vmatprep.subr.mxu0 0.0
    %244 = vmatpush2.msra.mxu0 0.0
    %245 = vmatprep.subr.mxu0 0.0
    %246 = vmatpush2.msra.mxu0 0.0
    %247 = vmatprep.subr.mxu0 0.0
    %248 = vmatpush2.msra.mxu0 0.0
    %249 = vmatprep.subr.mxu0 0.0
    %250 = vmatpush2.msra.mxu0 0.0
    %251 = vmatprep.subr.mxu0 0.0
    %252 = vmatpush2.msra.mxu0 0.0
    %253 = vmatprep.subr.mxu0 0.0
    %254 = vmatpush2.msra.mxu0 0.0
    %255 = vmatprep.subr.mxu0 0.0
    %256 = vmatpush2.msra.mxu0 0.0
    %257 = vmatprep.subr.mxu0 0.0
    %258 = vmatpush2.msra.mxu0 0.0
    %259 = vmatprep.subr.mxu0 0.0
    %260 = vmatpush2.msra.mxu0 0.0
    %261 = vmatprep.subr.mxu0 0.0
    %262 = vmatpush2.msra.mxu0 0.0
    %263 = vmatprep.subr.mxu0 0.0
    %264 = vmatpush2.msra.mxu0 0.0
    %265 = vmatprep.mubr.f32.mxu0 0.0
    %v266 = vand.u32 %v33, 4294901760
    %v267 = vsub.f32 %v33, %v266
    %268 = vmatmul.mubr.f32.gmra.mxu0 %v267
    %v269 = vpop.f32.mrf.mxu0
    %v270 = vadd.f32 %v194, %v269
    %v271 = vpop.f32.mrf.mxu0
    %272 = vdwg.mxu0
    %273 = vmatprep.subr.mxu0 0.0
    %274 = vmatpush1.msra.mxu0 0.0
    %275 = vmatprep.subr.mxu0 0.0
    %276 = vmatpush1.msra.mxu0 0.0
    %277 = vmatprep.subr.mxu0 0.0
    %278 = vmatpush1.msra.mxu0 0.0
    %279 = vmatprep.subr.mxu0 0.0
    %280 = vmatpush1.msra.mxu0 0.0
    %281 = vmatprep.subr.mxu0 0.0
    %282 = vmatpush1.msra.mxu0 0.0
    %283 = vmatprep.subr.mxu0 0.0
    %284 = vmatpush1.msra.mxu0 0.0
    %285 = vmatprep.subr.mxu0 0.0
    %286 = vmatpush1.msra.mxu0 0.0
    %287 = vmatprep.subr.mxu0 0.0
    %288 = vmatpush1.msra.mxu0 0.0
    %289 = vmatprep.subr.mxu0 0.0
    %290 = vmatpush1.msra.mxu0 0.0
    %291 = vmatprep.subr.mxu0 0.0
    %292 = vmatpush1.msra.mxu0 0.0
    %293 = vmatprep.subr.mxu0 0.0
    %294 = vmatpush1.msra.mxu0 0.0
    %295 = vmatprep.subr.mxu0 0.0
    %296 = vmatpush1.msra.mxu0 0.0
    %297 = vmatprep.subr.mxu0 0.0
    %298 = vmatpush1.msra.mxu0 0.0
    %299 = vmatprep.subr.mxu0 0.0
    %300 = vmatpush1.msra.mxu0 0.0
    %301 = vmatprep.subr.mxu0 0.0
    %v302 = vand.u32 %v37, 4294901760
    %303 = vmatpush1.msra.mxu0 %v302
    %304 = vmatprep.subr.mxu0 0.0
    %v305 = vand.u32 %v22, 4294901760
    %306 = vmatpush1.msra.mxu0 %v305
    %307 = vmatprep.subr.mxu0 0.0
    %308 = vmatpush2.msra.mxu0 0.0
    %309 = vmatprep.subr.mxu0 0.0
    %310 = vmatpush2.msra.mxu0 0.0
    %311 = vmatprep.subr.mxu0 0.0
    %312 = vmatpush2.msra.mxu0 0.0
    %313 = vmatprep.subr.mxu0 0.0
    %314 = vmatpush2.msra.mxu0 0.0
    %315 = vmatprep.subr.mxu0 0.0
    %316 = vmatpush2.msra.mxu0 0.0
    %317 = vmatprep.subr.mxu0 0.0
    %318 = vmatpush2.msra.mxu0 0.0
    %319 = vmatprep.subr.mxu0 0.0
    %320 = vmatpush2.msra.mxu0 0.0
    %321 = vmatprep.subr.mxu0 0.0
    %322 = vmatpush2.msra.mxu0 0.0
    %323 = vmatprep.subr.mxu0 0.0
    %324 = vmatpush2.msra.mxu0 0.0
    %325 = vmatprep.subr.mxu0 0.0
    %326 = vmatpush2.msra.mxu0 0.0
    %327 = vmatprep.subr.mxu0 0.0
    %328 = vmatpush2.msra.mxu0 0.0
    %329 = vmatprep.subr.mxu0 0.0
    %330 = vmatpush2.msra.mxu0 0.0
    %331 = vmatprep.subr.mxu0 0.0
    %332 = vmatpush2.msra.mxu0 0.0
    %333 = vmatprep.subr.mxu0 0.0
    %334 = vmatpush2.msra.mxu0 0.0
    %335 = vmatprep.subr.mxu0 0.0
    %336 = vmatpush2.msra.mxu0 0.0
    %337 = vmatprep.subr.mxu0 0.0
    %338 = vmatpush2.msra.mxu0 0.0
    %339 = vmatprep.mubr.f32.mxu0 0.0
    %v340 = vand.u32 %v33, 4294901760
    %v341 = vsub.f32 %v33, %v340
    %v342 = vand.u32 %v341, 4294901760
    %343 = vmatmul.mubr.f32.gmra.mxu0 %v342
    %v344 = vpop.f32.mrf.mxu0
    %v345 = vadd.f32 %v270, %v344
    %v346 = vpop.f32.mrf.mxu0
    %347 = vdwg.mxu0
    %348 = vmatprep.subr.mxu0 0.0
    %349 = vmatpush1.msra.mxu0 0.0
    %350 = vmatprep.subr.mxu0 0.0
    %351 = vmatpush1.msra.mxu0 0.0
    %352 = vmatprep.subr.mxu0 0.0
    %353 = vmatpush1.msra.mxu0 0.0
    %354 = vmatprep.subr.mxu0 0.0
    %355 = vmatpush1.msra.mxu0 0.0
    %356 = vmatprep.subr.mxu0 0.0
    %357 = vmatpush1.msra.mxu0 0.0
    %358 = vmatprep.subr.mxu0 0.0
    %359 = vmatpush1.msra.mxu0 0.0
    %360 = vmatprep.subr.mxu0 0.0
    %361 = vmatpush1.msra.mxu0 0.0
    %362 = vmatprep.subr.mxu0 0.0
    %363 = vmatpush1.msra.mxu0 0.0
    %364 = vmatprep.subr.mxu0 0.0
    %365 = vmatpush1.msra.mxu0 0.0
    %366 = vmatprep.subr.mxu0 0.0
    %367 = vmatpush1.msra.mxu0 0.0
    %368 = vmatprep.subr.mxu0 0.0
    %369 = vmatpush1.msra.mxu0 0.0
    %370 = vmatprep.subr.mxu0 0.0
    %371 = vmatpush1.msra.mxu0 0.0
    %372 = vmatprep.subr.mxu0 0.0
    %373 = vmatpush1.msra.mxu0 0.0
    %374 = vmatprep.subr.mxu0 0.0
    %375 = vmatpush1.msra.mxu0 0.0
    %376 = vmatprep.subr.mxu0 0.0
    %v377 = vand.u32 %v37, 4294901760
    %v378 = vsub.f32 %v37, %v377
    %v379 = vand.u32 %v378, 4294901760
    %380 = vmatpush1.msra.mxu0 %v379
    %381 = vmatprep.subr.mxu0 0.0
    %v382 = vand.u32 %v22, 4294901760
    %v383 = vsub.f32 %v22, %v382
    %v384 = vand.u32 %v383, 4294901760
    %385 = vmatpush1.msra.mxu0 %v384
    %386 = vmatprep.subr.mxu0 0.0
    %387 = vmatpush2.msra.mxu0 0.0
    %388 = vmatprep.subr.mxu0 0.0
    %389 = vmatpush2.msra.mxu0 0.0
    %390 = vmatprep.subr.mxu0 0.0
    %391 = vmatpush2.msra.mxu0 0.0
    %392 = vmatprep.subr.mxu0 0.0
    %393 = vmatpush2.msra.mxu0 0.0
    %394 = vmatprep.subr.mxu0 0.0
    %395 = vmatpush2.msra.mxu0 0.0
    %396 = vmatprep.subr.mxu0 0.0
    %397 = vmatpush2.msra.mxu0 0.0
    %398 = vmatprep.subr.mxu0 0.0
    %399 = vmatpush2.msra.mxu0 0.0
    %400 = vmatprep.subr.mxu0 0.0
    %401 = vmatpush2.msra.mxu0 0.0
    %402 = vmatprep.subr.mxu0 0.0
    %403 = vmatpush2.msra.mxu0 0.0
    %404 = vmatprep.subr.mxu0 0.0
    %405 = vmatpush2.msra.mxu0 0.0
    %406 = vmatprep.subr.mxu0 0.0
    %407 = vmatpush2.msra.mxu0 0.0
    %408 = vmatprep.subr.mxu0 0.0
    %409 = vmatpush2.msra.mxu0 0.0
    %410 = vmatprep.subr.mxu0 0.0
    %411 = vmatpush2.msra.mxu0 0.0
    %412 = vmatprep.subr.mxu0 0.0
    %413 = vmatpush2.msra.mxu0 0.0
    %414 = vmatprep.subr.mxu0 0.0
    %415 = vmatpush2.msra.mxu0 0.0
    %416 = vmatprep.subr.mxu0 0.0
    %417 = vmatpush2.msra.mxu0 0.0
    %418 = vmatprep.mubr.f32.mxu0 0.0
    %v419 = vand.u32 %v33, 4294901760
    %420 = vmatmul.mubr.f32.gmra.mxu0 %v419
    %v421 = vpop.f32.mrf.mxu0
    %v422 = vadd.f32 %v345, %v421
    %v423 = vpop.f32.mrf.mxu0
    %424 = vdwg.mxu0
    %425 = vmatprep.subr.mxu0 0.0
    %426 = vmatpush1.msra.mxu0 0.0
    %427 = vmatprep.subr.mxu0 0.0
    %428 = vmatpush1.msra.mxu0 0.0
    %429 = vmatprep.subr.mxu0 0.0
    %430 = vmatpush1.msra.mxu0 0.0
    %431 = vmatprep.subr.mxu0 0.0
    %432 = vmatpush1.msra.mxu0 0.0
    %433 = vmatprep.subr.mxu0 0.0
    %434 = vmatpush1.msra.mxu0 0.0
    %435 = vmatprep.subr.mxu0 0.0
    %436 = vmatpush1.msra.mxu0 0.0
    %437 = vmatprep.subr.mxu0 0.0
    %438 = vmatpush1.msra.mxu0 0.0
    %439 = vmatprep.subr.mxu0 0.0
    %440 = vmatpush1.msra.mxu0 0.0
    %441 = vmatprep.subr.mxu0 0.0
    %442 = vmatpush1.msra.mxu0 0.0
    %443 = vmatprep.subr.mxu0 0.0
    %444 = vmatpush1.msra.mxu0 0.0
    %445 = vmatprep.subr.mxu0 0.0
    %446 = vmatpush1.msra.mxu0 0.0
    %447 = vmatprep.subr.mxu0 0.0
    %448 = vmatpush1.msra.mxu0 0.0
    %449 = vmatprep.subr.mxu0 0.0
    %450 = vmatpush1.msra.mxu0 0.0
    %451 = vmatprep.subr.mxu0 0.0
    %452 = vmatpush1.msra.mxu0 0.0
    %453 = vmatprep.subr.mxu0 0.0
    %v454 = vand.u32 %v37, 4294901760
    %455 = vmatpush1.msra.mxu0 %v454
    %456 = vmatprep.subr.mxu0 0.0
    %v457 = vand.u32 %v22, 4294901760
    %458 = vmatpush1.msra.mxu0 %v457
    %459 = vmatprep.subr.mxu0 0.0
    %460 = vmatpush2.msra.mxu0 0.0
    %461 = vmatprep.subr.mxu0 0.0
    %462 = vmatpush2.msra.mxu0 0.0
    %463 = vmatprep.subr.mxu0 0.0
    %464 = vmatpush2.msra.mxu0 0.0
    %465 = vmatprep.subr.mxu0 0.0
    %466 = vmatpush2.msra.mxu0 0.0
    %467 = vmatprep.subr.mxu0 0.0
    %468 = vmatpush2.msra.mxu0 0.0
    %469 = vmatprep.subr.mxu0 0.0
    %470 = vmatpush2.msra.mxu0 0.0
    %471 = vmatprep.subr.mxu0 0.0
    %472 = vmatpush2.msra.mxu0 0.0
    %473 = vmatprep.subr.mxu0 0.0
    %474 = vmatpush2.msra.mxu0 0.0
    %475 = vmatprep.subr.mxu0 0.0
    %476 = vmatpush2.msra.mxu0 0.0
    %477 = vmatprep.subr.mxu0 0.0
    %478 = vmatpush2.msra.mxu0 0.0
    %479 = vmatprep.subr.mxu0 0.0
    %480 = vmatpush2.msra.mxu0 0.0
    %481 = vmatprep.subr.mxu0 0.0
    %482 = vmatpush2.msra.mxu0 0.0
    %483 = vmatprep.subr.mxu0 0.0
    %484 = vmatpush2.msra.mxu0 0.0
    %485 = vmatprep.subr.mxu0 0.0
    %486 = vmatpush2.msra.mxu0 0.0
    %487 = vmatprep.subr.mxu0 0.0
    %488 = vmatpush2.msra.mxu0 0.0
    %489 = vmatprep.subr.mxu0 0.0
    %490 = vmatpush2.msra.mxu0 0.0
    %491 = vmatprep.mubr.f32.mxu0 0.0
    %v492 = vand.u32 %v33, 4294901760
    %493 = vmatmul.mubr.f32.gmra.mxu0 %v492
    %v494 = vpop.f32.mrf.mxu0
    %v495 = vadd.f32 %v422, %v494
    %v496 = vpop.f32.mrf.mxu0
    %497 = vdwg.mxu0
    %v498 = vmax.f32 %v495, 0.0
    %v499 = vld [vmem:[%s3] sm:$0xff]
    %v500 = vld [vmem:[%s3 + $0x8] sm:$0x3]
    %v501 = vld [vmem:[%s4] sm:$0x1]
    %v503 = vlaneseq
    %v504 = vshrl.u32 %v503, 7
    %v505 = vsub.s32 0, %v504
    %v506 = vrot.slane %v501, %v505
    %v509 = vsel %vm31, %v498, 0
    %v512 = vsel %vm35, %v500, 0
    %514 = vmatprep.subr.mxu0 0.0
    %515 = vmatpush1.msra.mxu0 0.0
    %516 = vmatprep.subr.mxu0 0.0
    %517 = vmatpush1.msra.mxu0 0.0
    %518 = vmatprep.subr.mxu0 0.0
    %519 = vmatpush1.msra.mxu0 0.0
    %520 = vmatprep.subr.mxu0 0.0
    %521 = vmatpush1.msra.mxu0 0.0
    %522 = vmatprep.subr.mxu0 0.0
    %523 = vmatpush1.msra.mxu0 0.0
    %524 = vmatprep.subr.mxu0 0.0
    %525 = vmatpush1.msra.mxu0 0.0
    %526 = vmatprep.subr.mxu0 0.0
    %527 = vmatpush1.msra.mxu0 0.0
    %528 = vmatprep.subr.mxu0 0.0
    %529 = vmatpush1.msra.mxu0 0.0
    %530 = vmatprep.subr.mxu0 0.0
    %531 = vmatpush1.msra.mxu0 0.0
    %532 = vmatprep.subr.mxu0 0.0
    %533 = vmatpush1.msra.mxu0 0.0
    %534 = vmatprep.subr.mxu0 0.0
    %535 = vmatpush1.msra.mxu0 0.0
    %536 = vmatprep.subr.mxu0 0.0
    %537 = vmatpush1.msra.mxu0 0.0
    %538 = vmatprep.subr.mxu0 0.0
    %539 = vmatpush1.msra.mxu0 0.0
    %540 = vmatprep.subr.mxu0 0.0
    %541 = vmatpush1.msra.mxu0 0.0
    %542 = vmatprep.subr.mxu0 0.0
    %v543 = vand.u32 %v512, 4294901760
    %544 = vmatpush1.msra.mxu0 %v543
    %545 = vmatprep.subr.mxu0 0.0
    %v546 = vand.u32 %v499, 4294901760
    %547 = vmatpush1.msra.mxu0 %v546
    %548 = vmatprep.subr.mxu0 0.0
    %549 = vmatpush2.msra.mxu0 0.0
    %550 = vmatprep.subr.mxu0 0.0
    %551 = vmatpush2.msra.mxu0 0.0
    %552 = vmatprep.subr.mxu0 0.0
    %553 = vmatpush2.msra.mxu0 0.0
    %554 = vmatprep.subr.mxu0 0.0
    %555 = vmatpush2.msra.mxu0 0.0
    %556 = vmatprep.subr.mxu0 0.0
    %557 = vmatpush2.msra.mxu0 0.0
    %558 = vmatprep.subr.mxu0 0.0
    %559 = vmatpush2.msra.mxu0 0.0
    %560 = vmatprep.subr.mxu0 0.0
    %561 = vmatpush2.msra.mxu0 0.0
    %562 = vmatprep.subr.mxu0 0.0
    %563 = vmatpush2.msra.mxu0 0.0
    %564 = vmatprep.subr.mxu0 0.0
    %565 = vmatpush2.msra.mxu0 0.0
    %566 = vmatprep.subr.mxu0 0.0
    %567 = vmatpush2.msra.mxu0 0.0
    %568 = vmatprep.subr.mxu0 0.0
    %569 = vmatpush2.msra.mxu0 0.0
    %570 = vmatprep.subr.mxu0 0.0
    %571 = vmatpush2.msra.mxu0 0.0
    %572 = vmatprep.subr.mxu0 0.0
    %573 = vmatpush2.msra.mxu0 0.0
    %574 = vmatprep.subr.mxu0 0.0
    %575 = vmatpush2.msra.mxu0 0.0
    %576 = vmatprep.subr.mxu0 0.0
    %577 = vmatpush2.msra.mxu0 0.0
    %578 = vmatprep.subr.mxu0 0.0
    %579 = vmatpush2.msra.mxu0 0.0
    %580 = vmatprep.mubr.f32.mxu0 0.0
    %v581 = vand.u32 %v509, 4294901760
    %v582 = vsub.f32 %v509, %v581
    %v583 = vand.u32 %v582, 4294901760
    %v584 = vsub.f32 %v582, %v583
    %v585 = vand.u32 %v584, 4294901760
    %586 = vmatmul.mubr.f32.gmra.mxu0 %v585
    %v587 = vpop.f32.mrf.mxu0
    %v588 = vadd.f32 %v506, %v587
    %v589 = vpop.f32.mrf.mxu0
    %590 = vdwg.mxu0
    %591 = vmatprep.subr.mxu0 0.0
    %592 = vmatpush1.msra.mxu0 0.0
    %593 = vmatprep.subr.mxu0 0.0
    %594 = vmatpush1.msra.mxu0 0.0
    %595 = vmatprep.subr.mxu0 0.0
    %596 = vmatpush1.msra.mxu0 0.0
    %597 = vmatprep.subr.mxu0 0.0
    %598 = vmatpush1.msra.mxu0 0.0
    %599 = vmatprep.subr.mxu0 0.0
    %600 = vmatpush1.msra.mxu0 0.0
    %601 = vmatprep.subr.mxu0 0.0
    %602 = vmatpush1.msra.mxu0 0.0
    %603 = vmatprep.subr.mxu0 0.0
    %604 = vmatpush1.msra.mxu0 0.0
    %605 = vmatprep.subr.mxu0 0.0
    %606 = vmatpush1.msra.mxu0 0.0
    %607 = vmatprep.subr.mxu0 0.0
    %608 = vmatpush1.msra.mxu0 0.0
    %609 = vmatprep.subr.mxu0 0.0
    %610 = vmatpush1.msra.mxu0 0.0
    %611 = vmatprep.subr.mxu0 0.0
    %612 = vmatpush1.msra.mxu0 0.0
    %613 = vmatprep.subr.mxu0 0.0
    %614 = vmatpush1.msra.mxu0 0.0
    %615 = vmatprep.subr.mxu0 0.0
    %616 = vmatpush1.msra.mxu0 0.0
    %617 = vmatprep.subr.mxu0 0.0
    %618 = vmatpush1.msra.mxu0 0.0
    %619 = vmatprep.subr.mxu0 0.0
    %v620 = vand.u32 %v512, 4294901760
    %v621 = vsub.f32 %v512, %v620
    %v622 = vand.u32 %v621, 4294901760
    %v623 = vsub.f32 %v621, %v622
    %v624 = vand.u32 %v623, 4294901760
    %625 = vmatpush1.msra.mxu0 %v624
    %626 = vmatprep.subr.mxu0 0.0
    %v627 = vand.u32 %v499, 4294901760
    %v628 = vsub.f32 %v499, %v627
    %v629 = vand.u32 %v628, 4294901760
    %v630 = vsub.f32 %v628, %v629
    %v631 = vand.u32 %v630, 4294901760
    %632 = vmatpush1.msra.mxu0 %v631
    %633 = vmatprep.subr.mxu0 0.0
    %634 = vmatpush2.msra.mxu0 0.0
    %635 = vmatprep.subr.mxu0 0.0
    %636 = vmatpush2.msra.mxu0 0.0
    %637 = vmatprep.subr.mxu0 0.0
    %638 = vmatpush2.msra.mxu0 0.0
    %639 = vmatprep.subr.mxu0 0.0
    %640 = vmatpush2.msra.mxu0 0.0
    %641 = vmatprep.subr.mxu0 0.0
    %642 = vmatpush2.msra.mxu0 0.0
    %643 = vmatprep.subr.mxu0 0.0
    %644 = vmatpush2.msra.mxu0 0.0
    %645 = vmatprep.subr.mxu0 0.0
    %646 = vmatpush2.msra.mxu0 0.0
    %647 = vmatprep.subr.mxu0 0.0
    %648 = vmatpush2.msra.mxu0 0.0
    %649 = vmatprep.subr.mxu0 0.0
    %650 = vmatpush2.msra.mxu0 0.0
    %651 = vmatprep.subr.mxu0 0.0
    %652 = vmatpush2.msra.mxu0 0.0
    %653 = vmatprep.subr.mxu0 0.0
    %654 = vmatpush2.msra.mxu0 0.0
    %655 = vmatprep.subr.mxu0 0.0
    %656 = vmatpush2.msra.mxu0 0.0
    %657 = vmatprep.subr.mxu0 0.0
    %658 = vmatpush2.msra.mxu0 0.0
    %659 = vmatprep.subr.mxu0 0.0
    %660 = vmatpush2.msra.mxu0 0.0
    %661 = vmatprep.subr.mxu0 0.0
    %662 = vmatpush2.msra.mxu0 0.0
    %663 = vmatprep.subr.mxu0 0.0
    %664 = vmatpush2.msra.mxu0 0.0
    %665 = vmatprep.mubr.f32.mxu0 0.0
    %v666 = vand.u32 %v509, 4294901760
    %667 = vmatmul.mubr.f32.gmra.mxu0 %v666
    %v668 = vpop.f32.mrf.mxu0
    %v669 = vadd.f32 %v588, %v668
    %v670 = vpop.f32.mrf.mxu0
    %671 = vdwg.mxu0
    %672 = vmatprep.subr.mxu0 0.0
    %673 = vmatpush1.msra.mxu0 0.0
    %674 = vmatprep.subr.mxu0 0.0
    %675 = vmatpush1.msra.mxu0 0.0
    %676 = vmatprep.subr.mxu0 0.0
    %677 = vmatpush1.msra.mxu0 0.0
    %678 = vmatprep.subr.mxu0 0.0
    %679 = vmatpush1.msra.mxu0 0.0
    %680 = vmatprep.subr.mxu0 0.0
    %681 = vmatpush1.msra.mxu0 0.0
    %682 = vmatprep.subr.mxu0 0.0
    %683 = vmatpush1.msra.mxu0 0.0
    %684 = vmatprep.subr.mxu0 0.0
    %685 = vmatpush1.msra.mxu0 0.0
    %686 = vmatprep.subr.mxu0 0.0
    %687 = vmatpush1.msra.mxu0 0.0
    %688 = vmatprep.subr.mxu0 0.0
    %689 = vmatpush1.msra.mxu0 0.0
    %690 = vmatprep.subr.mxu0 0.0
    %691 = vmatpush1.msra.mxu0 0.0
    %692 = vmatprep.subr.mxu0 0.0
    %693 = vmatpush1.msra.mxu0 0.0
    %694 = vmatprep.subr.mxu0 0.0
    %695 = vmatpush1.msra.mxu0 0.0
    %696 = vmatprep.subr.mxu0 0.0
    %697 = vmatpush1.msra.mxu0 0.0
    %698 = vmatprep.subr.mxu0 0.0
    %699 = vmatpush1.msra.mxu0 0.0
    %700 = vmatprep.subr.mxu0 0.0
    %v701 = vand.u32 %v512, 4294901760
    %v702 = vsub.f32 %v512, %v701
    %703 = vmatpush1.msra.mxu0 %v702
    %704 = vmatprep.subr.mxu0 0.0
    %v705 = vand.u32 %v499, 4294901760
    %v706 = vsub.f32 %v499, %v705
    %707 = vmatpush1.msra.mxu0 %v706
    %708 = vmatprep.subr.mxu0 0.0
    %709 = vmatpush2.msra.mxu0 0.0
    %710 = vmatprep.subr.mxu0 0.0
    %711 = vmatpush2.msra.mxu0 0.0
    %712 = vmatprep.subr.mxu0 0.0
    %713 = vmatpush2.msra.mxu0 0.0
    %714 = vmatprep.subr.mxu0 0.0
    %715 = vmatpush2.msra.mxu0 0.0
    %716 = vmatprep.subr.mxu0 0.0
    %717 = vmatpush2.msra.mxu0 0.0
    %718 = vmatprep.subr.mxu0 0.0
    %719 = vmatpush2.msra.mxu0 0.0
    %720 = vmatprep.subr.mxu0 0.0
    %721 = vmatpush2.msra.mxu0 0.0
    %722 = vmatprep.subr.mxu0 0.0
    %723 = vmatpush2.msra.mxu0 0.0
    %724 = vmatprep.subr.mxu0 0.0
    %725 = vmatpush2.msra.mxu0 0.0
    %726 = vmatprep.subr.mxu0 0.0
    %727 = vmatpush2.msra.mxu0 0.0
    %728 = vmatprep.subr.mxu0 0.0
    %729 = vmatpush2.msra.mxu0 0.0
    %730 = vmatprep.subr.mxu0 0.0
    %731 = vmatpush2.msra.mxu0 0.0
    %732 = vmatprep.subr.mxu0 0.0
    %733 = vmatpush2.msra.mxu0 0.0
    %734 = vmatprep.subr.mxu0 0.0
    %735 = vmatpush2.msra.mxu0 0.0
    %736 = vmatprep.subr.mxu0 0.0
    %737 = vmatpush2.msra.mxu0 0.0
    %738 = vmatprep.subr.mxu0 0.0
    %739 = vmatpush2.msra.mxu0 0.0
    %740 = vmatprep.mubr.f32.mxu0 0.0
    %v741 = vand.u32 %v509, 4294901760
    %v742 = vsub.f32 %v509, %v741
    %743 = vmatmul.mubr.f32.gmra.mxu0 %v742
    %v744 = vpop.f32.mrf.mxu0
    %v745 = vadd.f32 %v669, %v744
    %v746 = vpop.f32.mrf.mxu0
    %747 = vdwg.mxu0
    %748 = vmatprep.subr.mxu0 0.0
    %749 = vmatpush1.msra.mxu0 0.0
    %750 = vmatprep.subr.mxu0 0.0
    %751 = vmatpush1.msra.mxu0 0.0
    %752 = vmatprep.subr.mxu0 0.0
    %753 = vmatpush1.msra.mxu0 0.0
    %754 = vmatprep.subr.mxu0 0.0
    %755 = vmatpush1.msra.mxu0 0.0
    %756 = vmatprep.subr.mxu0 0.0
    %757 = vmatpush1.msra.mxu0 0.0
    %758 = vmatprep.subr.mxu0 0.0
    %759 = vmatpush1.msra.mxu0 0.0
    %760 = vmatprep.subr.mxu0 0.0
    %761 = vmatpush1.msra.mxu0 0.0
    %762 = vmatprep.subr.mxu0 0.0
    %763 = vmatpush1.msra.mxu0 0.0
    %764 = vmatprep.subr.mxu0 0.0
    %765 = vmatpush1.msra.mxu0 0.0
    %766 = vmatprep.subr.mxu0 0.0
    %767 = vmatpush1.msra.mxu0 0.0
    %768 = vmatprep.subr.mxu0 0.0
    %769 = vmatpush1.msra.mxu0 0.0
    %770 = vmatprep.subr.mxu0 0.0
    %771 = vmatpush1.msra.mxu0 0.0
    %772 = vmatprep.subr.mxu0 0.0
    %773 = vmatpush1.msra.mxu0 0.0
    %774 = vmatprep.subr.mxu0 0.0
    %775 = vmatpush1.msra.mxu0 0.0
    %776 = vmatprep.subr.mxu0 0.0
    %v777 = vand.u32 %v512, 4294901760
    %778 = vmatpush1.msra.mxu0 %v777
    %779 = vmatprep.subr.mxu0 0.0
    %v780 = vand.u32 %v499, 4294901760
    %781 = vmatpush1.msra.mxu0 %v780
    %782 = vmatprep.subr.mxu0 0.0
    %783 = vmatpush2.msra.mxu0 0.0
    %784 = vmatprep.subr.mxu0 0.0
    %785 = vmatpush2.msra.mxu0 0.0
    %786 = vmatprep.subr.mxu0 0.0
    %787 = vmatpush2.msra.mxu0 0.0
    %788 = vmatprep.subr.mxu0 0.0
    %789 = vmatpush2.msra.mxu0 0.0
    %790 = vmatprep.subr.mxu0 0.0
    %791 = vmatpush2.msra.mxu0 0.0
    %792 = vmatprep.subr.mxu0 0.0
    %793 = vmatpush2.msra.mxu0 0.0
    %794 = vmatprep.subr.mxu0 0.0
    %795 = vmatpush2.msra.mxu0 0.0
    %796 = vmatprep.subr.mxu0 0.0
    %797 = vmatpush2.msra.mxu0 0.0
    %798 = vmatprep.subr.mxu0 0.0
    %799 = vmatpush2.msra.mxu0 0.0
    %800 = vmatprep.subr.mxu0 0.0
    %801 = vmatpush2.msra.mxu0 0.0
    %802 = vmatprep.subr.mxu0 0.0
    %803 = vmatpush2.msra.mxu0 0.0
    %804 = vmatprep.subr.mxu0 0.0
    %805 = vmatpush2.msra.mxu0 0.0
    %806 = vmatprep.subr.mxu0 0.0
    %807 = vmatpush2.msra.mxu0 0.0
    %808 = vmatprep.subr.mxu0 0.0
    %809 = vmatpush2.msra.mxu0 0.0
    %810 = vmatprep.subr.mxu0 0.0
    %811 = vmatpush2.msra.mxu0 0.0
    %812 = vmatprep.subr.mxu0 0.0
    %813 = vmatpush2.msra.mxu0 0.0
    %814 = vmatprep.mubr.f32.mxu0 0.0
    %v815 = vand.u32 %v509, 4294901760
    %v816 = vsub.f32 %v509, %v815
    %v817 = vand.u32 %v816, 4294901760
    %818 = vmatmul.mubr.f32.gmra.mxu0 %v817
    %v819 = vpop.f32.mrf.mxu0
    %v820 = vadd.f32 %v745, %v819
    %v821 = vpop.f32.mrf.mxu0
    %822 = vdwg.mxu0
    %823 = vmatprep.subr.mxu0 0.0
    %824 = vmatpush1.msra.mxu0 0.0
    %825 = vmatprep.subr.mxu0 0.0
    %826 = vmatpush1.msra.mxu0 0.0
    %827 = vmatprep.subr.mxu0 0.0
    %828 = vmatpush1.msra.mxu0 0.0
    %829 = vmatprep.subr.mxu0 0.0
    %830 = vmatpush1.msra.mxu0 0.0
    %831 = vmatprep.subr.mxu0 0.0
    %832 = vmatpush1.msra.mxu0 0.0
    %833 = vmatprep.subr.mxu0 0.0
    %834 = vmatpush1.msra.mxu0 0.0
    %835 = vmatprep.subr.mxu0 0.0
    %836 = vmatpush1.msra.mxu0 0.0
    %837 = vmatprep.subr.mxu0 0.0
    %838 = vmatpush1.msra.mxu0 0.0
    %839 = vmatprep.subr.mxu0 0.0
    %840 = vmatpush1.msra.mxu0 0.0
    %841 = vmatprep.subr.mxu0 0.0
    %842 = vmatpush1.msra.mxu0 0.0
    %843 = vmatprep.subr.mxu0 0.0
    %844 = vmatpush1.msra.mxu0 0.0
    %845 = vmatprep.subr.mxu0 0.0
    %846 = vmatpush1.msra.mxu0 0.0
    %847 = vmatprep.subr.mxu0 0.0
    %848 = vmatpush1.msra.mxu0 0.0
    %849 = vmatprep.subr.mxu0 0.0
    %850 = vmatpush1.msra.mxu0 0.0
    %851 = vmatprep.subr.mxu0 0.0
    %v852 = vand.u32 %v512, 4294901760
    %v853 = vsub.f32 %v512, %v852
    %v854 = vand.u32 %v853, 4294901760
    %855 = vmatpush1.msra.mxu0 %v854
    %856 = vmatprep.subr.mxu0 0.0
    %v857 = vand.u32 %v499, 4294901760
    %v858 = vsub.f32 %v499, %v857
    %v859 = vand.u32 %v858, 4294901760
    %860 = vmatpush1.msra.mxu0 %v859
    %861 = vmatprep.subr.mxu0 0.0
    %862 = vmatpush2.msra.mxu0 0.0
    %863 = vmatprep.subr.mxu0 0.0
    %864 = vmatpush2.msra.mxu0 0.0
    %865 = vmatprep.subr.mxu0 0.0
    %866 = vmatpush2.msra.mxu0 0.0
    %867 = vmatprep.subr.mxu0 0.0
    %868 = vmatpush2.msra.mxu0 0.0
    %869 = vmatprep.subr.mxu0 0.0
    %870 = vmatpush2.msra.mxu0 0.0
    %871 = vmatprep.subr.mxu0 0.0
    %872 = vmatpush2.msra.mxu0 0.0
    %873 = vmatprep.subr.mxu0 0.0
    %874 = vmatpush2.msra.mxu0 0.0
    %875 = vmatprep.subr.mxu0 0.0
    %876 = vmatpush2.msra.mxu0 0.0
    %877 = vmatprep.subr.mxu0 0.0
    %878 = vmatpush2.msra.mxu0 0.0
    %879 = vmatprep.subr.mxu0 0.0
    %880 = vmatpush2.msra.mxu0 0.0
    %881 = vmatprep.subr.mxu0 0.0
    %882 = vmatpush2.msra.mxu0 0.0
    %883 = vmatprep.subr.mxu0 0.0
    %884 = vmatpush2.msra.mxu0 0.0
    %885 = vmatprep.subr.mxu0 0.0
    %886 = vmatpush2.msra.mxu0 0.0
    %887 = vmatprep.subr.mxu0 0.0
    %888 = vmatpush2.msra.mxu0 0.0
    %889 = vmatprep.subr.mxu0 0.0
    %890 = vmatpush2.msra.mxu0 0.0
    %891 = vmatprep.subr.mxu0 0.0
    %892 = vmatpush2.msra.mxu0 0.0
    %893 = vmatprep.mubr.f32.mxu0 0.0
    %v894 = vand.u32 %v509, 4294901760
    %895 = vmatmul.mubr.f32.gmra.mxu0 %v894
    %v896 = vpop.f32.mrf.mxu0
    %v897 = vadd.f32 %v820, %v896
    %v898 = vpop.f32.mrf.mxu0
    %899 = vdwg.mxu0
    %900 = vmatprep.subr.mxu0 0.0
    %901 = vmatpush1.msra.mxu0 0.0
    %902 = vmatprep.subr.mxu0 0.0
    %903 = vmatpush1.msra.mxu0 0.0
    %904 = vmatprep.subr.mxu0 0.0
    %905 = vmatpush1.msra.mxu0 0.0
    %906 = vmatprep.subr.mxu0 0.0
    %907 = vmatpush1.msra.mxu0 0.0
    %908 = vmatprep.subr.mxu0 0.0
    %909 = vmatpush1.msra.mxu0 0.0
    %910 = vmatprep.subr.mxu0 0.0
    %911 = vmatpush1.msra.mxu0 0.0
    %912 = vmatprep.subr.mxu0 0.0
    %913 = vmatpush1.msra.mxu0 0.0
    %914 = vmatprep.subr.mxu0 0.0
    %915 = vmatpush1.msra.mxu0 0.0
    %916 = vmatprep.subr.mxu0 0.0
    %917 = vmatpush1.msra.mxu0 0.0
    %918 = vmatprep.subr.mxu0 0.0
    %919 = vmatpush1.msra.mxu0 0.0
    %920 = vmatprep.subr.mxu0 0.0
    %921 = vmatpush1.msra.mxu0 0.0
    %922 = vmatprep.subr.mxu0 0.0
    %923 = vmatpush1.msra.mxu0 0.0
    %924 = vmatprep.subr.mxu0 0.0
    %925 = vmatpush1.msra.mxu0 0.0
    %926 = vmatprep.subr.mxu0 0.0
    %927 = vmatpush1.msra.mxu0 0.0
    %928 = vmatprep.subr.mxu0 0.0
    %v929 = vand.u32 %v512, 4294901760
    %930 = vmatpush1.msra.mxu0 %v929
    %931 = vmatprep.subr.mxu0 0.0
    %v932 = vand.u32 %v499, 4294901760
    %933 = vmatpush1.msra.mxu0 %v932
    %934 = vmatprep.subr.mxu0 0.0
    %935 = vmatpush2.msra.mxu0 0.0
    %936 = vmatprep.subr.mxu0 0.0
    %937 = vmatpush2.msra.mxu0 0.0
    %938 = vmatprep.subr.mxu0 0.0
    %939 = vmatpush2.msra.mxu0 0.0
    %940 = vmatprep.subr.mxu0 0.0
    %941 = vmatpush2.msra.mxu0 0.0
    %942 = vmatprep.subr.mxu0 0.0
    %943 = vmatpush2.msra.mxu0 0.0
    %944 = vmatprep.subr.mxu0 0.0
    %945 = vmatpush2.msra.mxu0 0.0
    %946 = vmatprep.subr.mxu0 0.0
    %947 = vmatpush2.msra.mxu0 0.0
    %948 = vmatprep.subr.mxu0 0.0
    %949 = vmatpush2.msra.mxu0 0.0
    %950 = vmatprep.subr.mxu0 0.0
    %951 = vmatpush2.msra.mxu0 0.0
    %952 = vmatprep.subr.mxu0 0.0
    %953 = vmatpush2.msra.mxu0 0.0
    %954 = vmatprep.subr.mxu0 0.0
    %955 = vmatpush2.msra.mxu0 0.0
    %956 = vmatprep.subr.mxu0 0.0
    %957 = vmatpush2.msra.mxu0 0.0
    %958 = vmatprep.subr.mxu0 0.0
    %959 = vmatpush2.msra.mxu0 0.0
    %960 = vmatprep.subr.mxu0 0.0
    %961 = vmatpush2.msra.mxu0 0.0
    %962 = vmatprep.subr.mxu0 0.0
    %963 = vmatpush2.msra.mxu0 0.0
    %964 = vmatprep.subr.mxu0 0.0
    %965 = vmatpush2.msra.mxu0 0.0
    %966 = vmatprep.mubr.f32.mxu0 0.0
    %v967 = vand.u32 %v509, 4294901760
    %968 = vmatmul.mubr.f32.gmra.mxu0 %v967
    %v969 = vpop.f32.mrf.mxu0
    %v970 = vadd.f32 %v897, %v969
    %v971 = vpop.f32.mrf.mxu0
    %972 = vdwg.mxu0
    %vm973 = vcmask 39936
    %974 = vst.msk [vmem:[#allocation2] sm:$0xff] %vm973, %v970
    // Predicated region
    $region22: #{toy_model_forward.1} parent=1 // pred_check
      _
    $region23: #{toy_model_forward.1} parent=1 // pred_check_branch
      %976 = sbr.rel (0) target = $region25
    $region24: #{toy_model_forward.1} parent=1 // pred_region
      %s978 = ssub.s32 128, 128
      %979 = vsyncadd [#allocation3], %s978
      %s981 = sshll.u32 [#allocation2], 4
      %s982 = int_to_ptr.vmem [resolvable:$true] %s981
      %984 = dma.vmem_to_hbm [thread:$0]  %s982, 128, %s5, [#allocation3]
    $region25: #{toy_model_forward.1} parent=1 // pred_fallthru
      _
    // Predicated region
    $region26: #{toy_model_forward.1} parent=1 // pred_check
      _
    $region27: #{toy_model_forward.1} parent=1 // pred_check_branch
      %986 = sbr.rel (0) target = $region29
    $region28: #{toy_model_forward.1} parent=1 // pred_region
      %987 = dma.done [#allocation3], 128
    $region29: #{toy_model_forward.1} parent=1 // pred_fallthru
      _
    %988 = vsyncpa [#allocation3], 1

</llo_original>
